<compile_context>
chip_gen: v7x
topology: tpu7x:2x2x1
jax: 0.10.0
libtpu: 0.0.40
codegen_flags: <defaults>
</compile_context>

<pallas_src>
import jax
import jax.numpy as jnp
from jax import lax
from jax.experimental import pallas as pl
from jax.experimental.pallas import tpu as pltpu

block_size = 8      # max sequence length (causal mask size)
n_embed = 32        # embedding dim C
head_size = 16      # attention head size


def head_kernel(x_ref, wk_ref, wv_ref, o_ref):
    # x_ref:  (B, T, C)  whole input as a single VMEM block (no grid)
    # wk_ref: (C, H)     key projection weights   (also used for q: q == k)
    # wv_ref: (C, H)     value projection weights
    # o_ref:  (B, T, H)
    B, T, C = x_ref.shape
    H = o_ref.shape[2]

    # Flatten (B, T) so each projection is ONE 2-D MXU matmul (16x32 @ 32x16).
    # T == 8 == sublane count, so this reshape is tile-aligned (free).
    x2 = x_ref[...].reshape(B * T, C)

    # The module computes q = key(x), so q == k exactly -> one projection
    # serves both and the redundant q matmul is dropped.
    k2 = jnp.dot(x2, wk_ref[...], preferred_element_type=jnp.float32)   # (B*T, H)
    v2 = jnp.dot(x2, wv_ref[...], preferred_element_type=jnp.float32)   # (B*T, H)
    k = k2.reshape(B, T, H)
    v = v2.reshape(B, T, H)

    # scores[b] = k[b] @ k[b].T, contracted on the last axes so no explicit
    # transpose is materialized before the MXU op.  Scale uses C = n_embed
    # (the module's quirk), applied as a single-vreg VPU multiply.
    scale = jnp.float32(C) ** -0.5
    scores = lax.dot_general(
        k, k,
        dimension_numbers=(((2,), (2,)), ((0,), (0,))),
        preferred_element_type=jnp.float32) * scale                      # (B, T, T)

    # causal (lower-triangular) mask; large finite negative instead of -inf
    # (same softmax result: exp underflows to exactly 0, but robust if a row
    #  were ever fully masked).
    row = lax.broadcasted_iota(jnp.int32, (T, T), 0)
    col = lax.broadcasted_iota(jnp.int32, (T, T), 1)
    scores = jnp.where((col <= row)[None, :, :], scores, jnp.float32(-1e30))

    # numerically stable softmax with an exact divide.
    m = jnp.max(scores, axis=-1, keepdims=True)
    e = jnp.exp(scores - m)
    s = jnp.sum(e, axis=-1, keepdims=True)
    w = e / s                                                            # (B, T, T)

    out = lax.dot_general(
        w, v,
        dimension_numbers=(((2,), (1,)), ((0,), (0,))),
        preferred_element_type=jnp.float32)                              # (B, T, H)
    o_ref[...] = out.astype(o_ref.dtype)


def head_forward(x, w_key, w_value):
    """x: (B, T, C) float32; w_key/w_value: (C, head_size) float32."""
    B, T, C = x.shape
    H = w_key.shape[1]
    # Whole arrays as single VMEM-resident blocks: total footprint is a few
    # KiB, so any tiling / grid would add pure per-step overhead.  Wrapper is
    # a bare pallas_call: no per-call weight concatenation or reshapes.
    return pl.pallas_call(
        head_kernel,
        out_shape=jax.ShapeDtypeStruct((B, T, H), x.dtype),
        in_specs=[
            pl.BlockSpec(memory_space=pltpu.MemorySpace.VMEM),
            pl.BlockSpec(memory_space=pltpu.MemorySpace.VMEM),
            pl.BlockSpec(memory_space=pltpu.MemorySpace.VMEM),
        ],
        out_specs=pl.BlockSpec(memory_space=pltpu.MemorySpace.VMEM),
    )(x, w_key, w_value)


def reference_forward(x, w_key, w_value):
    """Pure-JAX reference mirroring the PyTorch module exactly."""
    B, T, C = x.shape
    k = x @ w_key
    q = x @ w_key          # quirk: q uses key weights
    scores = (q @ jnp.swapaxes(k, -2, -1)) * (C ** -0.5)
    tril = jnp.tril(jnp.ones((block_size, block_size)))
    scores = jnp.where(tril[:T, :T] == 0, -jnp.inf, scores)
    w = jax.nn.softmax(scores, axis=-1)
    v = x @ w_value
    return w @ v


if __name__ == "__main__":
    key = jax.random.PRNGKey(0)
    kx, kq, kk, kv = jax.random.split(key, 4)

    B, T, C = 2, block_size, n_embed
    x = jax.random.normal(kx, (B, T, C), dtype=jnp.float32)

    # Deterministic parameter init (synthetic). PyTorch Linear weight is
    # (head_size, n_embed); we store the transpose (n_embed, head_size).
    bound = 1.0 / (n_embed ** 0.5)
    w_query = jax.random.uniform(kq, (n_embed, head_size), jnp.float32, -bound, bound)  # unused, as in module
    w_key = jax.random.uniform(kk, (n_embed, head_size), jnp.float32, -bound, bound)
    w_value = jax.random.uniform(kv, (n_embed, head_size), jnp.float32, -bound, bound)

    out = head_forward(x, w_key, w_value)
    out = jax.block_until_ready(out)

    ref = reference_forward(x, w_key, w_value)
    assert out.shape == (B, T, head_size)
    assert jnp.allclose(out, ref, atol=1e-4, rtol=1e-4), "mismatch vs reference"

    print("KERNEL_OK")
</pallas_src>

<mosaic_0001>
module attributes {stable_mosaic.version = 11 : i64} {
  func.func @head_kernel(%arg0: memref<2x8x32xf32, #tpu.memory_space<vmem>>, %arg1: memref<32x16xf32, #tpu.memory_space<vmem>>, %arg2: memref<32x16xf32, #tpu.memory_space<vmem>>, %arg3: memref<2x8x16xf32, #tpu.memory_space<vmem>>) attributes {dimension_semantics = [], scalar_prefetch = 0 : i64, scratch_operands = 0 : i64, tpu.core_type = #tpu.core_type<tc>} {
    %c0 = arith.constant 0 : index
    %c0_0 = arith.constant 0 : index
    %c0_1 = arith.constant 0 : index
    %0 = vector.load %arg0[%c0, %c0_0, %c0_1] : memref<2x8x32xf32, #tpu.memory_space<vmem>>, vector<2x8x32xf32>
    %1 = vector.shape_cast %0 : vector<2x8x32xf32> to vector<16x32xf32>
    %c0_2 = arith.constant 0 : index
    %c0_3 = arith.constant 0 : index
    %2 = vector.load %arg1[%c0_2, %c0_3] : memref<32x16xf32, #tpu.memory_space<vmem>>, vector<32x16xf32>
    %cst = arith.constant dense<0.000000e+00> : vector<16x16xf32>
    %3 = tpu.matmul %1, %2, %cst {dimension_numbers = #tpu.dot_dimension_numbers<[1], [0], [0], [1], [0, 0, 1, 1], [], []>} : vector<16x32xf32>, vector<32x16xf32>, vector<16x16xf32> -> vector<16x16xf32>
    %c0_4 = arith.constant 0 : index
    %c0_5 = arith.constant 0 : index
    %4 = vector.load %arg2[%c0_4, %c0_5] : memref<32x16xf32, #tpu.memory_space<vmem>>, vector<32x16xf32>
    %cst_6 = arith.constant dense<0.000000e+00> : vector<16x16xf32>
    %5 = tpu.matmul %1, %4, %cst_6 {dimension_numbers = #tpu.dot_dimension_numbers<[1], [0], [0], [1], [0, 0, 1, 1], [], []>} : vector<16x32xf32>, vector<32x16xf32>, vector<16x16xf32> -> vector<16x16xf32>
    %6 = vector.shape_cast %3 : vector<16x16xf32> to vector<2x8x16xf32>
    %7 = vector.shape_cast %5 : vector<16x16xf32> to vector<2x8x16xf32>
    %cst_7 = arith.constant 3.200000e+01 : f32
    %cst_8 = arith.constant -5.000000e-01 : f32
    %8 = math.powf %cst_7, %cst_8 : f32
    %cst_9 = arith.constant dense<0.000000e+00> : vector<2x8x8xf32>
    %9 = tpu.matmul %6, %6, %cst_9 {dimension_numbers = #tpu.dot_dimension_numbers<[2], [2], [1], [1], [0, 0, 0, 1, 1, 1], [0], [0]>} : vector<2x8x16xf32>, vector<2x8x16xf32>, vector<2x8x8xf32> -> vector<2x8x8xf32>
    %10 = vector.broadcast %8 : f32 to vector<2x8x8xf32>
    %11 = arith.mulf %9, %10 : vector<2x8x8xf32>
    %12 = tpu.iota {dimensions = array<i32: 0>} : vector<8x8xi32>
    %13 = tpu.iota {dimensions = array<i32: 1>} : vector<8x8xi32>
    %14 = arith.cmpi sle, %13, %12 : vector<8x8xi32>
    %15 = vector.shape_cast %14 : vector<8x8xi1> to vector<1x8x8xi1>
    %cst_10 = arith.constant -1.000000e+30 : f32
    %16 = vector.shape_cast %15 : vector<1x8x8xi1> to vector<1x8x8xi1>
    %17 = vector.broadcast %16 : vector<1x8x8xi1> to vector<2x8x8xi1>
    %18 = vector.broadcast %cst_10 : f32 to vector<2x8x8xf32>
    %19 = arith.select %17, %11, %18 : vector<2x8x8xi1>, vector<2x8x8xf32>
    %cst_11 = arith.constant dense<0xFF800000> : vector<2x8xf32>
    %20 = vector.multi_reduction <maximumf>, %19, %cst_11 [2] : vector<2x8x8xf32> to vector<2x8xf32>
    %21 = vector.shape_cast %20 : vector<2x8xf32> to vector<2x8x1xf32>
    %22 = vector.broadcast %21 : vector<2x8x1xf32> to vector<2x8x8xf32>
    %23 = arith.subf %19, %22 : vector<2x8x8xf32>
    %24 = math.exp %23 : vector<2x8x8xf32>
    %cst_12 = arith.constant dense<0.000000e+00> : vector<2x8xf32>
    %25 = vector.multi_reduction <add>, %24, %cst_12 [2] : vector<2x8x8xf32> to vector<2x8xf32>
    %26 = vector.shape_cast %25 : vector<2x8xf32> to vector<2x8x1xf32>
    %27 = vector.broadcast %26 : vector<2x8x1xf32> to vector<2x8x8xf32>
    %28 = arith.divf %24, %27 : vector<2x8x8xf32>
    %cst_13 = arith.constant dense<0.000000e+00> : vector<2x8x16xf32>
    %29 = tpu.matmul %28, %7, %cst_13 {dimension_numbers = #tpu.dot_dimension_numbers<[2], [1], [1], [2], [0, 0, 0, 1, 1, 2], [0], [0]>} : vector<2x8x8xf32>, vector<2x8x16xf32>, vector<2x8x16xf32> -> vector<2x8x16xf32>
    %c0_14 = arith.constant 0 : index
    %c0_15 = arith.constant 0 : index
    %c0_16 = arith.constant 0 : index
    %30 = vector.load %arg3[%c0_14, %c0_15, %c0_16] : memref<2x8x16xf32, #tpu.memory_space<vmem>>, vector<2x8x16xf32>
    tpu.vector_store %arg3[%c0_14, %c0_15, %c0_16], %29 {strides = array<i32>} : memref<2x8x16xf32, #tpu.memory_space<vmem>>, vector<2x8x16xf32>,
    return
  }
}

</mosaic_0001>

<llo_original>
// kernel: tpu_custom_call.1
$region0: #{tpu_custom_call.1}
  #allocation0 [shape = 'u32[]', space=smem, size = 0x4, offset = 0x4, fixed_abs, tag = 'smem constant byte address 0x4 - core index']
  #allocation1 [shape = 'u32[144,128]{1,0:T(1,128)}', space=vmem, size = 0x12000, scoped, tag = 'internal scratch']
  %s0 = inlined_call_operand.vmem [shape: f32[2,8,32], index: 0, kind: input, shape index: {}]
  %s1 = inlined_call_operand.vmem [shape: f32[32,16], index: 1, kind: input, shape index: {}]
  %s2 = inlined_call_operand.vmem [shape: f32[32,16], index: 2, kind: input, shape index: {}]
  %s3 = inlined_call_operand.hbm [shape: f32[2,8,16], index: 3, kind: output, shape index: {}]
  %s4 = sld [smem:[#allocation0]]
  $region22: #{tpu_custom_call.1} parent=0
    _
  %s6 = ssub.s32 1, %s4
  %s7 = scalar_select 0, %s6, %s4
  $region1: #{tpu_custom_call.1} parent=0
    #allocation2 [shape = 'u8[8192]{0}', space=vmem, size = 0x2000, scoped, tag = 'output window, operand 0, single buffered']
    #allocation3 [shape = 's32[1]{0}', space=sflag, size = 0x4, scoped, tag = 'scoped memory for tpu_custom_call.1']
    %8 = vsyncpa [#allocation3], 0
    // Predicated region
    $region2: #{tpu_custom_call.1} parent=1 // pred_check
      _
    $region3: #{tpu_custom_call.1} parent=1 // pred_check_branch
      %10 = sbr.rel (0) target = $region5
    $region4: #{tpu_custom_call.1} parent=1 // pred_region
      _
    $region5: #{tpu_custom_call.1} parent=1 // pred_fallthru
      _
    // Predicated region
    $region6: #{tpu_custom_call.1} parent=1 // pred_check
      _
    $region7: #{tpu_custom_call.1} parent=1 // pred_check_branch
      %12 = sbr.rel (0) target = $region9
    $region8: #{tpu_custom_call.1} parent=1 // pred_region
      _
    $region9: #{tpu_custom_call.1} parent=1 // pred_fallthru
      _
    // Predicated region
    $region10: #{tpu_custom_call.1} parent=1 // pred_check
      _
    $region11: #{tpu_custom_call.1} parent=1 // pred_check_branch
      %14 = sbr.rel (0) target = $region13
    $region12: #{tpu_custom_call.1} parent=1 // pred_region
      _
    $region13: #{tpu_custom_call.1} parent=1 // pred_fallthru
      _
    %v15 = vld [vmem:[%s0] sm:$0xff]
    %v16 = vld [vmem:[%s0 + $0x8] sm:$0xff]
    %v17 = vld [vmem:[%s1] sm:$0xff]
    %v18 = vld [vmem:[%s1 + $0x8] sm:$0xff]
    %v19 = vld [vmem:[%s1 + $0x10] sm:$0xff]
    %v20 = vld [vmem:[%s1 + $0x18] sm:$0xff]
    %vm21 = vcmask 261120
    %v23 = vsel %vm21, %v15, 0
    %v26 = vsel %vm21, %v16, 0
    %28 = vmatprep.subr.mxu0 0.0
    %29 = vmatpush1.msra.mxu0 %v17
    %30 = vmatprep.subr.mxu0 0.0
    %31 = vmatpush1.msra.mxu0 %v18
    %32 = vmatprep.subr.mxu0 0.0
    %33 = vmatpush1.msra.mxu0 %v19
    %34 = vmatprep.subr.mxu0 0.0
    %35 = vmatpush1.msra.mxu0 %v20
    %36 = vmatprep.subr.mxu0 0.0
    %37 = vmatpush1.msra.mxu0 0.0
    %38 = vmatprep.subr.mxu0 0.0
    %39 = vmatpush1.msra.mxu0 0.0
    %40 = vmatprep.subr.mxu0 0.0
    %41 = vmatpush1.msra.mxu0 0.0
    %42 = vmatprep.subr.mxu0 0.0
    %43 = vmatpush1.msra.mxu0 0.0
    %44 = vmatprep.subr.mxu0 0.0
    %45 = vmatpush1.msra.mxu0 0.0
    %46 = vmatprep.subr.mxu0 0.0
    %47 = vmatpush1.msra.mxu0 0.0
    %48 = vmatprep.subr.mxu0 0.0
    %49 = vmatpush1.msra.mxu0 0.0
    %50 = vmatprep.subr.mxu0 0.0
    %51 = vmatpush1.msra.mxu0 0.0
    %52 = vmatprep.subr.mxu0 0.0
    %53 = vmatpush1.msra.mxu0 0.0
    %54 = vmatprep.subr.mxu0 0.0
    %55 = vmatpush1.msra.mxu0 0.0
    %56 = vmatprep.subr.mxu0 0.0
    %57 = vmatpush1.msra.mxu0 0.0
    %58 = vmatprep.subr.mxu0 0.0
    %59 = vmatpush1.msra.mxu0 0.0
    %60 = vmatprep.subr.mxu0 0.0
    %61 = vmatpush1.msra.mxu0 0.0
    %62 = vmatprep.subr.mxu0 0.0
    %63 = vmatpush1.msra.mxu0 0.0
    %64 = vmatprep.subr.mxu0 0.0
    %65 = vmatpush1.msra.mxu0 0.0
    %66 = vmatprep.subr.mxu0 0.0
    %67 = vmatpush1.msra.mxu0 0.0
    %68 = vmatprep.subr.mxu0 0.0
    %69 = vmatpush1.msra.mxu0 0.0
    %70 = vmatprep.subr.mxu0 0.0
    %71 = vmatpush1.msra.mxu0 0.0
    %72 = vmatprep.subr.mxu0 0.0
    %73 = vmatpush1.msra.mxu0 0.0
    %74 = vmatprep.subr.mxu0 0.0
    %75 = vmatpush1.msra.mxu0 0.0
    %76 = vmatprep.subr.mxu0 0.0
    %77 = vmatpush1.msra.mxu0 0.0
    %78 = vmatprep.subr.mxu0 0.0
    %79 = vmatpush1.msra.mxu0 0.0
    %80 = vmatprep.subr.mxu0 0.0
    %81 = vmatpush1.msra.mxu0 0.0
    %82 = vmatprep.subr.mxu0 0.0
    %83 = vmatpush1.msra.mxu0 0.0
    %84 = vmatprep.subr.mxu0 0.0
    %85 = vmatpush1.msra.mxu0 0.0
    %86 = vmatprep.subr.mxu0 0.0
    %87 = vmatpush1.msra.mxu0 0.0
    %88 = vmatprep.subr.mxu0 0.0
    %89 = vmatpush1.msra.mxu0 0.0
    %90 = vmatprep.subr.mxu0 0.0
    %91 = vmatpush1.msra.mxu0 0.0
    %92 = vmatprep.mubr.f32.mxu0 0.0
    %93 = vmatmul.mubr.f32.gmra.mrb[0].mxu0 %v23
    %v94 = vpop.f32.mrb[0].mxu0
    %v95 = vadd.f32 0.0, %v94
    %v96 = vpop.f32.mrb[0].mxu0
    %97 = vmatprep.mubr.f32.mxu0 0.0
    %98 = vmatmul.mubr.f32.gmra.mrb[0].mxu0 %v26
    %v99 = vpop.f32.mrb[0].mxu0
    %v100 = vadd.f32 0.0, %v99
    %v101 = vpop.f32.mrb[0].mxu0
    %102 = vdwg.mxu0
    %v103 = vld [vmem:[%s2] sm:$0xff]
    %v104 = vld [vmem:[%s2 + $0x8] sm:$0xff]
    %v105 = vld [vmem:[%s2 + $0x10] sm:$0xff]
    %v106 = vld [vmem:[%s2 + $0x18] sm:$0xff]
    %107 = vmatprep.subr.mxu0 0.0
    %108 = vmatpush1.msra.mxu0 %v103
    %109 = vmatprep.subr.mxu0 0.0
    %110 = vmatpush1.msra.mxu0 %v104
    %111 = vmatprep.subr.mxu0 0.0
    %112 = vmatpush1.msra.mxu0 %v105
    %113 = vmatprep.subr.mxu0 0.0
    %114 = vmatpush1.msra.mxu0 %v106
    %115 = vmatprep.subr.mxu0 0.0
    %116 = vmatpush1.msra.mxu0 0.0
    %117 = vmatprep.subr.mxu0 0.0
    %118 = vmatpush1.msra.mxu0 0.0
    %119 = vmatprep.subr.mxu0 0.0
    %120 = vmatpush1.msra.mxu0 0.0
    %121 = vmatprep.subr.mxu0 0.0
    %122 = vmatpush1.msra.mxu0 0.0
    %123 = vmatprep.subr.mxu0 0.0
    %124 = vmatpush1.msra.mxu0 0.0
    %125 = vmatprep.subr.mxu0 0.0
    %126 = vmatpush1.msra.mxu0 0.0
    %127 = vmatprep.subr.mxu0 0.0
    %128 = vmatpush1.msra.mxu0 0.0
    %129 = vmatprep.subr.mxu0 0.0
    %130 = vmatpush1.msra.mxu0 0.0
    %131 = vmatprep.subr.mxu0 0.0
    %132 = vmatpush1.msra.mxu0 0.0
    %133 = vmatprep.subr.mxu0 0.0
    %134 = vmatpush1.msra.mxu0 0.0
    %135 = vmatprep.subr.mxu0 0.0
    %136 = vmatpush1.msra.mxu0 0.0
    %137 = vmatprep.subr.mxu0 0.0
    %138 = vmatpush1.msra.mxu0 0.0
    %139 = vmatprep.subr.mxu0 0.0
    %140 = vmatpush1.msra.mxu0 0.0
    %141 = vmatprep.subr.mxu0 0.0
    %142 = vmatpush1.msra.mxu0 0.0
    %143 = vmatprep.subr.mxu0 0.0
    %144 = vmatpush1.msra.mxu0 0.0
    %145 = vmatprep.subr.mxu0 0.0
    %146 = vmatpush1.msra.mxu0 0.0
    %147 = vmatprep.subr.mxu0 0.0
    %148 = vmatpush1.msra.mxu0 0.0
    %149 = vmatprep.subr.mxu0 0.0
    %150 = vmatpush1.msra.mxu0 0.0
    %151 = vmatprep.subr.mxu0 0.0
    %152 = vmatpush1.msra.mxu0 0.0
    %153 = vmatprep.subr.mxu0 0.0
    %154 = vmatpush1.msra.mxu0 0.0
    %155 = vmatprep.subr.mxu0 0.0
    %156 = vmatpush1.msra.mxu0 0.0
    %157 = vmatprep.subr.mxu0 0.0
    %158 = vmatpush1.msra.mxu0 0.0
    %159 = vmatprep.subr.mxu0 0.0
    %160 = vmatpush1.msra.mxu0 0.0
    %161 = vmatprep.subr.mxu0 0.0
    %162 = vmatpush1.msra.mxu0 0.0
    %163 = vmatprep.subr.mxu0 0.0
    %164 = vmatpush1.msra.mxu0 0.0
    %165 = vmatprep.subr.mxu0 0.0
    %166 = vmatpush1.msra.mxu0 0.0
    %167 = vmatprep.subr.mxu0 0.0
    %168 = vmatpush1.msra.mxu0 0.0
    %169 = vmatprep.subr.mxu0 0.0
    %170 = vmatpush1.msra.mxu0 0.0
    %171 = vmatprep.mubr.f32.mxu0 0.0
    %172 = vmatmul.mubr.f32.gmra.mrb[0].mxu0 %v23
    %v173 = vpop.f32.mrb[0].mxu0
    %v174 = vadd.f32 0.0, %v173
    %v175 = vpop.f32.mrb[0].mxu0
    %176 = vmatprep.mubr.f32.mxu0 0.0
    %177 = vmatmul.mubr.f32.gmra.mrb[0].mxu0 %v26
    %v178 = vpop.f32.mrb[0].mxu0
    %v179 = vadd.f32 0.0, %v178
    %v180 = vpop.f32.mrb[0].mxu0
    %181 = vdwg.mxu0
    %vm182 = vcmask 130048
    %v184 = vsel %vm182, %v95, 0
    %186 = vmatprep.subr.mxu0 0.0
    %187 = vmatpush1.xpose.msra.mxu0 %v184
    %188 = vmatprep.subr.mxu0 0.0
    %189 = vmatpush1.xpose.msra.mxu0 0.0
    %190 = vmatprep.subr.mxu0 0.0
    %191 = vmatpush1.xpose.msra.mxu0 0.0
    %192 = vmatprep.subr.mxu0 0.0
    %193 = vmatpush1.xpose.msra.mxu0 0.0
    %194 = vmatprep.subr.mxu0 0.0
    %195 = vmatpush1.xpose.msra.mxu0 0.0
    %196 = vmatprep.subr.mxu0 0.0
    %197 = vmatpush1.xpose.msra.mxu0 0.0
    %198 = vmatprep.subr.mxu0 0.0
    %199 = vmatpush1.xpose.msra.mxu0 0.0
    %200 = vmatprep.subr.mxu0 0.0
    %201 = vmatpush1.xpose.msra.mxu0 0.0
    %202 = vmatprep.subr.mxu0 0.0
    %203 = vmatpush1.xpose.msra.mxu0 0.0
    %204 = vmatprep.subr.mxu0 0.0
    %205 = vmatpush1.xpose.msra.mxu0 0.0
    %206 = vmatprep.subr.mxu0 0.0
    %207 = vmatpush1.xpose.msra.mxu0 0.0
    %208 = vmatprep.subr.mxu0 0.0
    %209 = vmatpush1.xpose.msra.mxu0 0.0
    %210 = vmatprep.subr.mxu0 0.0
    %211 = vmatpush1.xpose.msra.mxu0 0.0
    %212 = vmatprep.subr.mxu0 0.0
    %213 = vmatpush1.xpose.msra.mxu0 0.0
    %214 = vmatprep.subr.mxu0 0.0
    %215 = vmatpush1.xpose.msra.mxu0 0.0
    %216 = vmatprep.subr.mxu0 0.0
    %217 = vmatpush1.xpose.msra.mxu0 0.0
    %218 = vmatprep.subr.mxu0 0.0
    %219 = vmatpush1.xpose.msra.mxu0 0.0
    %220 = vmatprep.subr.mxu0 0.0
    %221 = vmatpush1.xpose.msra.mxu0 0.0
    %222 = vmatprep.subr.mxu0 0.0
    %223 = vmatpush1.xpose.msra.mxu0 0.0
    %224 = vmatprep.subr.mxu0 0.0
    %225 = vmatpush1.xpose.msra.mxu0 0.0
    %226 = vmatprep.subr.mxu0 0.0
    %227 = vmatpush1.xpose.msra.mxu0 0.0
    %228 = vmatprep.subr.mxu0 0.0
    %229 = vmatpush1.xpose.msra.mxu0 0.0
    %230 = vmatprep.subr.mxu0 0.0
    %231 = vmatpush1.xpose.msra.mxu0 0.0
    %232 = vmatprep.subr.mxu0 0.0
    %233 = vmatpush1.xpose.msra.mxu0 0.0
    %234 = vmatprep.subr.mxu0 0.0
    %235 = vmatpush1.xpose.msra.mxu0 0.0
    %236 = vmatprep.subr.mxu0 0.0
    %237 = vmatpush1.xpose.msra.mxu0 0.0
    %238 = vmatprep.subr.mxu0 0.0
    %239 = vmatpush1.xpose.msra.mxu0 0.0
    %240 = vmatprep.subr.mxu0 0.0
    %241 = vmatpush1.xpose.msra.mxu0 0.0
    %242 = vmatprep.subr.mxu0 0.0
    %243 = vmatpush1.xpose.msra.mxu0 0.0
    %244 = vmatprep.subr.mxu0 0.0
    %245 = vmatpush1.xpose.msra.mxu0 0.0
    %246 = vmatprep.subr.mxu0 0.0
    %247 = vmatpush1.xpose.msra.mxu0 0.0
    %248 = vmatprep.subr.mxu0 0.0
    %249 = vmatpush1.xpose.msra.mxu0 0.0
    %250 = vmatprep.mubr.f32.mxu0 0.0
    %251 = vmatmul.mubr.f32.gmra.mrb[0].mxu0 %v184
    %v252 = vpop.f32.mrb[0].mxu0
    %v253 = vadd.f32 0.0, %v252
    %v254 = vpop.f32.mrb[0].mxu0
    %255 = vdwg.mxu0
    %v257 = vsel %vm182, %v100, 0
    %259 = vmatprep.subr.mxu0 0.0
    %260 = vmatpush1.xpose.msra.mxu0 %v257
    %261 = vmatprep.subr.mxu0 0.0
    %262 = vmatpush1.xpose.msra.mxu0 0.0
    %263 = vmatprep.subr.mxu0 0.0
    %264 = vmatpush1.xpose.msra.mxu0 0.0
    %265 = vmatprep.subr.mxu0 0.0
    %266 = vmatpush1.xpose.msra.mxu0 0.0
    %267 = vmatprep.subr.mxu0 0.0
    %268 = vmatpush1.xpose.msra.mxu0 0.0
    %269 = vmatprep.subr.mxu0 0.0
    %270 = vmatpush1.xpose.msra.mxu0 0.0
    %271 = vmatprep.subr.mxu0 0.0
    %272 = vmatpush1.xpose.msra.mxu0 0.0
    %273 = vmatprep.subr.mxu0 0.0
    %274 = vmatpush1.xpose.msra.mxu0 0.0
    %275 = vmatprep.subr.mxu0 0.0
    %276 = vmatpush1.xpose.msra.mxu0 0.0
    %277 = vmatprep.subr.mxu0 0.0
    %278 = vmatpush1.xpose.msra.mxu0 0.0
    %279 = vmatprep.subr.mxu0 0.0
    %280 = vmatpush1.xpose.msra.mxu0 0.0
    %281 = vmatprep.subr.mxu0 0.0
    %282 = vmatpush1.xpose.msra.mxu0 0.0
    %283 = vmatprep.subr.mxu0 0.0
    %284 = vmatpush1.xpose.msra.mxu0 0.0
    %285 = vmatprep.subr.mxu0 0.0
    %286 = vmatpush1.xpose.msra.mxu0 0.0
    %287 = vmatprep.subr.mxu0 0.0
    %288 = vmatpush1.xpose.msra.mxu0 0.0
    %289 = vmatprep.subr.mxu0 0.0
    %290 = vmatpush1.xpose.msra.mxu0 0.0
    %291 = vmatprep.subr.mxu0 0.0
    %292 = vmatpush1.xpose.msra.mxu0 0.0
    %293 = vmatprep.subr.mxu0 0.0
    %294 = vmatpush1.xpose.msra.mxu0 0.0
    %295 = vmatprep.subr.mxu0 0.0
    %296 = vmatpush1.xpose.msra.mxu0 0.0
    %297 = vmatprep.subr.mxu0 0.0
    %298 = vmatpush1.xpose.msra.mxu0 0.0
    %299 = vmatprep.subr.mxu0 0.0
    %300 = vmatpush1.xpose.msra.mxu0 0.0
    %301 = vmatprep.subr.mxu0 0.0
    %302 = vmatpush1.xpose.msra.mxu0 0.0
    %303 = vmatprep.subr.mxu0 0.0
    %304 = vmatpush1.xpose.msra.mxu0 0.0
    %305 = vmatprep.subr.mxu0 0.0
    %306 = vmatpush1.xpose.msra.mxu0 0.0
    %307 = vmatprep.subr.mxu0 0.0
    %308 = vmatpush1.xpose.msra.mxu0 0.0
    %309 = vmatprep.subr.mxu0 0.0
    %310 = vmatpush1.xpose.msra.mxu0 0.0
    %311 = vmatprep.subr.mxu0 0.0
    %312 = vmatpush1.xpose.msra.mxu0 0.0
    %313 = vmatprep.subr.mxu0 0.0
    %314 = vmatpush1.xpose.msra.mxu0 0.0
    %315 = vmatprep.subr.mxu0 0.0
    %316 = vmatpush1.xpose.msra.mxu0 0.0
    %317 = vmatprep.subr.mxu0 0.0
    %318 = vmatpush1.xpose.msra.mxu0 0.0
    %319 = vmatprep.subr.mxu0 0.0
    %320 = vmatpush1.xpose.msra.mxu0 0.0
    %321 = vmatprep.subr.mxu0 0.0
    %322 = vmatpush1.xpose.msra.mxu0 0.0
    %323 = vmatprep.mubr.f32.mxu0 0.0
    %324 = vmatmul.mubr.f32.gmra.mrb[0].mxu0 %v257
    %v325 = vpop.f32.mrb[0].mxu0
    %v326 = vadd.f32 0.0, %v325
    %v327 = vpop.f32.mrb[0].mxu0
    %328 = vdwg.mxu0
    %v329 = vmul.f32 %v253, 0.17677669
    %v330 = vmul.f32 %v326, 0.17677669
    %v331 = vlaneseq
    %v332 = vshrl.u32 %v331, 7
    %v333 = vlaneseq
    %v334 = vand.u32 %v333, 127
    %vm335 = vcmp.le.s32.totalorder %v334, %v332
    %v336 = vsel %vm335, 1, 0
    %vm337 = vcmp.eq.s32.totalorder %v336, 1
    %v338 = vsel %vm337, %v329, -1e+30
    %v339 = vsel %vm337, %v330, -1e+30
    %vm340 = vcmask 64512
    %v341 = vsel %vm340, %v338, -inf
    %342 = vmax.xlane.f32.xlu0 %v341
    %v343 = vpop.xlane.xlu0 %342
    %v344 = vsel %vm340, %v339, -inf
    %345 = vmax.xlane.f32.xlu0 %v344
    %v346 = vpop.xlane.xlu0 %345
    %v347 = vsub.f32 %v338, %v343
    %v348 = vsub.f32 %v339, %v346
    %v349 = vmul.f32 %v347, 1.442695
    %v350 = vpow.pop %v349
    %v351 = vmul.f32 %v348, 1.442695
    %v352 = vpow.pop %v351
    %v353 = vsel %vm340, %v350, 0.0
    %354 = vadd.xlane.f32.xlu0 %v353
    %v355 = vpop.xlane.xlu0 %354
    %v356 = vsel %vm340, %v352, 0.0
    %357 = vadd.xlane.f32.xlu0 %v356
    %v358 = vpop.xlane.xlu0 %357
    %v359 = vrcp.pop %v355
    %v360 = vmul.f32 %v350, %v359
    %v361 = vrcp.pop %v358
    %v362 = vmul.f32 %v352, %v361
    %v364 = vsel %vm340, %v360, 0
    %366 = vmatprep.subr.mxu0 0.0
    %367 = vmatpush1.msra.mxu0 %v174
    %368 = vmatprep.subr.mxu0 0.0
    %369 = vmatpush1.msra.mxu0 0.0
    %370 = vmatprep.subr.mxu0 0.0
    %371 = vmatpush1.msra.mxu0 0.0
    %372 = vmatprep.subr.mxu0 0.0
    %373 = vmatpush1.msra.mxu0 0.0
    %374 = vmatprep.subr.mxu0 0.0
    %375 = vmatpush1.msra.mxu0 0.0
    %376 = vmatprep.subr.mxu0 0.0
    %377 = vmatpush1.msra.mxu0 0.0
    %378 = vmatprep.subr.mxu0 0.0
    %379 = vmatpush1.msra.mxu0 0.0
    %380 = vmatprep.subr.mxu0 0.0
    %381 = vmatpush1.msra.mxu0 0.0
    %382 = vmatprep.subr.mxu0 0.0
    %383 = vmatpush1.msra.mxu0 0.0
    %384 = vmatprep.subr.mxu0 0.0
    %385 = vmatpush1.msra.mxu0 0.0
    %386 = vmatprep.subr.mxu0 0.0
    %387 = vmatpush1.msra.mxu0 0.0
    %388 = vmatprep.subr.mxu0 0.0
    %389 = vmatpush1.msra.mxu0 0.0
    %390 = vmatprep.subr.mxu0 0.0
    %391 = vmatpush1.msra.mxu0 0.0
    %392 = vmatprep.subr.mxu0 0.0
    %393 = vmatpush1.msra.mxu0 0.0
    %394 = vmatprep.subr.mxu0 0.0
    %395 = vmatpush1.msra.mxu0 0.0
    %396 = vmatprep.subr.mxu0 0.0
    %397 = vmatpush1.msra.mxu0 0.0
    %398 = vmatprep.subr.mxu0 0.0
    %399 = vmatpush1.msra.mxu0 0.0
    %400 = vmatprep.subr.mxu0 0.0
    %401 = vmatpush1.msra.mxu0 0.0
    %402 = vmatprep.subr.mxu0 0.0
    %403 = vmatpush1.msra.mxu0 0.0
    %404 = vmatprep.subr.mxu0 0.0
    %405 = vmatpush1.msra.mxu0 0.0
    %406 = vmatprep.subr.mxu0 0.0
    %407 = vmatpush1.msra.mxu0 0.0
    %408 = vmatprep.subr.mxu0 0.0
    %409 = vmatpush1.msra.mxu0 0.0
    %410 = vmatprep.subr.mxu0 0.0
    %411 = vmatpush1.msra.mxu0 0.0
    %412 = vmatprep.subr.mxu0 0.0
    %413 = vmatpush1.msra.mxu0 0.0
    %414 = vmatprep.subr.mxu0 0.0
    %415 = vmatpush1.msra.mxu0 0.0
    %416 = vmatprep.subr.mxu0 0.0
    %417 = vmatpush1.msra.mxu0 0.0
    %418 = vmatprep.subr.mxu0 0.0
    %419 = vmatpush1.msra.mxu0 0.0
    %420 = vmatprep.subr.mxu0 0.0
    %421 = vmatpush1.msra.mxu0 0.0
    %422 = vmatprep.subr.mxu0 0.0
    %423 = vmatpush1.msra.mxu0 0.0
    %424 = vmatprep.subr.mxu0 0.0
    %425 = vmatpush1.msra.mxu0 0.0
    %426 = vmatprep.subr.mxu0 0.0
    %427 = vmatpush1.msra.mxu0 0.0
    %428 = vmatprep.subr.mxu0 0.0
    %429 = vmatpush1.msra.mxu0 0.0
    %430 = vmatprep.mubr.f32.mxu0 0.0
    %431 = vmatmul.mubr.f32.gmra.mrb[0].mxu0 %v364
    %v432 = vpop.f32.mrb[0].mxu0
    %v433 = vadd.f32 0.0, %v432
    %v434 = vpop.f32.mrb[0].mxu0
    %435 = vdwg.mxu0
    %v437 = vsel %vm340, %v362, 0
    %439 = vmatprep.subr.mxu0 0.0
    %440 = vmatpush1.msra.mxu0 %v179
    %441 = vmatprep.subr.mxu0 0.0
    %442 = vmatpush1.msra.mxu0 0.0
    %443 = vmatprep.subr.mxu0 0.0
    %444 = vmatpush1.msra.mxu0 0.0
    %445 = vmatprep.subr.mxu0 0.0
    %446 = vmatpush1.msra.mxu0 0.0
    %447 = vmatprep.subr.mxu0 0.0
    %448 = vmatpush1.msra.mxu0 0.0
    %449 = vmatprep.subr.mxu0 0.0
    %450 = vmatpush1.msra.mxu0 0.0
    %451 = vmatprep.subr.mxu0 0.0
    %452 = vmatpush1.msra.mxu0 0.0
    %453 = vmatprep.subr.mxu0 0.0
    %454 = vmatpush1.msra.mxu0 0.0
    %455 = vmatprep.subr.mxu0 0.0
    %456 = vmatpush1.msra.mxu0 0.0
    %457 = vmatprep.subr.mxu0 0.0
    %458 = vmatpush1.msra.mxu0 0.0
    %459 = vmatprep.subr.mxu0 0.0
    %460 = vmatpush1.msra.mxu0 0.0
    %461 = vmatprep.subr.mxu0 0.0
    %462 = vmatpush1.msra.mxu0 0.0
    %463 = vmatprep.subr.mxu0 0.0
    %464 = vmatpush1.msra.mxu0 0.0
    %465 = vmatprep.subr.mxu0 0.0
    %466 = vmatpush1.msra.mxu0 0.0
    %467 = vmatprep.subr.mxu0 0.0
    %468 = vmatpush1.msra.mxu0 0.0
    %469 = vmatprep.subr.mxu0 0.0
    %470 = vmatpush1.msra.mxu0 0.0
    %471 = vmatprep.subr.mxu0 0.0
    %472 = vmatpush1.msra.mxu0 0.0
    %473 = vmatprep.subr.mxu0 0.0
    %474 = vmatpush1.msra.mxu0 0.0
    %475 = vmatprep.subr.mxu0 0.0
    %476 = vmatpush1.msra.mxu0 0.0
    %477 = vmatprep.subr.mxu0 0.0
    %478 = vmatpush1.msra.mxu0 0.0
    %479 = vmatprep.subr.mxu0 0.0
    %480 = vmatpush1.msra.mxu0 0.0
    %481 = vmatprep.subr.mxu0 0.0
    %482 = vmatpush1.msra.mxu0 0.0
    %483 = vmatprep.subr.mxu0 0.0
    %484 = vmatpush1.msra.mxu0 0.0
    %485 = vmatprep.subr.mxu0 0.0
    %486 = vmatpush1.msra.mxu0 0.0
    %487 = vmatprep.subr.mxu0 0.0
    %488 = vmatpush1.msra.mxu0 0.0
    %489 = vmatprep.subr.mxu0 0.0
    %490 = vmatpush1.msra.mxu0 0.0
    %491 = vmatprep.subr.mxu0 0.0
    %492 = vmatpush1.msra.mxu0 0.0
    %493 = vmatprep.subr.mxu0 0.0
    %494 = vmatpush1.msra.mxu0 0.0
    %495 = vmatprep.subr.mxu0 0.0
    %496 = vmatpush1.msra.mxu0 0.0
    %497 = vmatprep.subr.mxu0 0.0
    %498 = vmatpush1.msra.mxu0 0.0
    %499 = vmatprep.subr.mxu0 0.0
    %500 = vmatpush1.msra.mxu0 0.0
    %501 = vmatprep.subr.mxu0 0.0
    %502 = vmatpush1.msra.mxu0 0.0
    %503 = vmatprep.mubr.f32.mxu0 0.0
    %504 = vmatmul.mubr.f32.gmra.mrb[0].mxu0 %v437
    %v505 = vpop.f32.mrb[0].mxu0
    %v506 = vadd.f32 0.0, %v505
    %v507 = vpop.f32.mrb[0].mxu0
    %508 = vdwg.mxu0
    %509 = vst.msk [vmem:[#allocation2] sm:$0xff] %vm182, %v433
    %510 = vst.msk [vmem:[#allocation2 + $0x8] sm:$0xff] %vm182, %v506
    // Predicated region
    $region14: #{tpu_custom_call.1} parent=1 // pred_check
      _
    $region15: #{tpu_custom_call.1} parent=1 // pred_check_branch
      %512 = sbr.rel (0) target = $region17
    $region16: #{tpu_custom_call.1} parent=1 // pred_region
      %s514 = ssub.s32 256, 256
      %515 = vsyncadd [#allocation3], %s514
      %s516 = sshll.u32 [#allocation2], 4
      %s517 = int_to_ptr.vmem [resolvable:$true] %s516
      %522 = dma.vmem_to_hbm [thread:$0]  %s517, 256, %s3, [#allocation3], 128, 128, 8
    $region17: #{tpu_custom_call.1} parent=1 // pred_fallthru
      _
    // Predicated region
    $region18: #{tpu_custom_call.1} parent=1 // pred_check
      _
    $region19: #{tpu_custom_call.1} parent=1 // pred_check_branch
      %524 = sbr.rel (0) target = $region21
    $region20: #{tpu_custom_call.1} parent=1 // pred_region
      %525 = dma.done [#allocation3], 256
    $region21: #{tpu_custom_call.1} parent=1 // pred_fallthru
      _
    %526 = vsyncpa [#allocation3], 1

</llo_original>
